<compile_context>
chip_gen: v5e
topology: v5e:2x2
jax: 0.10.0
libtpu: 0.0.40
codegen_flags: <defaults>
</compile_context>

<pallas_src>
import functools

import jax
import jax.numpy as jnp
from jax.experimental import pallas as pl
from jax.experimental.pallas import tpu as pltpu


def _logreg_kernel(x_ref, w_ref, b_ref, o_ref):
    # x_ref: [TILE_B, D] (input dtype), w_ref: [1, D] (input dtype),
    # b_ref: [1, 1] f32 in SMEM, o_ref: [1, TILE_B] f32 (lane-dense output).
    x = x_ref[...]
    w = w_ref[...]
    # NT matvec: contract the feature dim of both operands so the result is a
    # (1, TILE_B) row with the batch on the lane axis. f32 MXU accumulation.
    logits = jnp.einsum("od,bd->ob", w, x, preferred_element_type=jnp.float32)
    logits = logits + b_ref[0, 0]
    # sigmoid(z) = 0.5 * (tanh(z / 2) + 1): one EUP op, no VPU divide.
    o_ref[...] = (0.5 * (jnp.tanh(0.5 * logits) + 1.0)).astype(o_ref.dtype)


def _round_up(x, m):
    return (x + m - 1) // m * m


def _vmem_budget_bytes():
    """Generation-aware scoped-VMEM budget (also used as vmem_limit_bytes)."""
    cap = None
    try:
        info = pltpu.get_tpu_info()
        cap = getattr(info, "vmem_capacity_bytes", None)
    except Exception:
        cap = None
    if not cap:
        cap = 64 * 1024 * 1024  # conservative fallback: v7x per-core VMEM
    # Half of physical, capped at 64 MiB: -> 64 MiB on v5e/v6e (128 MiB
    # physical), 32 MiB on v7x (64 MiB physical).
    return int(min(cap // 2, 64 * 1024 * 1024))


def _pick_tile_b(batch, d, itemsize, vmem_budget):
    """Rows per X block, sized by bytes against the scoped-VMEM budget."""
    row_bytes = max(1, d * itemsize)
    # One X buffer targets ~1/4 of the budget: two double-buffered X blocks
    # plus the resident W tile and the tiny output leave ample headroom.
    byte_tile = max(8, (vmem_budget // 4) // row_bytes)
    if batch >= 256:
        # Keep at least two grid steps so the "parallel" batch axis can be
        # sharded across both TensorCores on v7x.
        cap = _round_up(pl.cdiv(batch, 2), 128)
    else:
        cap = _round_up(batch, 8)
    tile = min(byte_tile, cap)
    # Lane-dense (multiple of 128) when affordable; sublane granule otherwise.
    tile = _round_up(tile, 128) if tile >= 128 else _round_up(tile, 8)
    return max(8, int(tile))


_FASTPATH_MAX_X_BYTES = 256 * 1024  # below this, pallas dispatch overhead dominates


@functools.partial(jax.jit, static_argnames=("allow_xla_fastpath",))
def logistic_regression_forward(x, weight, bias, *, allow_xla_fastpath=True):
    """x: [B, D], weight: [1, D] (nn.Linear layout), bias: scalar -> [B, 1] f32."""
    B, D = x.shape
    w2d = jnp.asarray(weight).reshape(1, D).astype(x.dtype)   # tiny cast only
    b_f32 = jnp.asarray(bias, jnp.float32)

    if allow_xla_fastpath and B * D * x.dtype.itemsize <= _FASTPATH_MAX_X_BYTES:
        # Tiny problem: one fused XLA op beats a pallas_call dispatch.
        logits = jnp.dot(x, w2d.T, preferred_element_type=jnp.float32) + b_f32
        return jax.nn.sigmoid(logits).astype(jnp.float32)

    vmem_budget = _vmem_budget_bytes()
    tile_b = _pick_tile_b(B, D, x.dtype.itemsize, vmem_budget)
    num_tiles = pl.cdiv(B, tile_b)
    b_arr = b_f32.reshape(1, 1)

    # TODO(synk): for very large input_size D (one X block exceeding the VMEM
    # budget), add a reduction grid axis over D with a f32 VMEM accumulator
    # (pl.when init/finalize); typical feature counts fit in one block.
    out = pl.pallas_call(
        _logreg_kernel,
        out_shape=jax.ShapeDtypeStruct((num_tiles, 1, tile_b), jnp.float32),
        grid=(num_tiles,),
        in_specs=[
            # X streamed in its native dtype; the ragged last block (when
            # B % tile_b != 0) is boundary-padded by Pallas and its rows are
            # sliced off below.
            pl.BlockSpec((tile_b, D), lambda i: (i, 0)),
            pl.BlockSpec((1, D), lambda i: (0, 0)),        # W stays resident
            pl.BlockSpec(memory_space=pltpu.SMEM),         # bias scalar
        ],
        out_specs=pl.BlockSpec((None, 1, tile_b), lambda i: (i, 0, 0)),
        compiler_params=pltpu.CompilerParams(
            dimension_semantics=("parallel",),
            vmem_limit_bytes=vmem_budget,
        ),
    )(x, w2d, b_arr)

    # (num_tiles, 1, tile_b) row-major is exactly batch order; drop the
    # (possibly garbage) rows >= B coming from the ragged last block.
    return out.reshape(num_tiles * tile_b, 1)[:B]


if __name__ == "__main__":
    key = jax.random.PRNGKey(0)
    kx, kw, kb = jax.random.split(key, 3)

    B, D = 8, 32  # batch=8, input_size=32 (matches the PyTorch module)

    x = jax.random.normal(kx, (B, D), dtype=jnp.float32)
    # nn.Linear-style init: U(-1/sqrt(D), 1/sqrt(D)); weight layout [1, D].
    bound = 1.0 / jnp.sqrt(jnp.float32(D))
    weight = jax.random.uniform(kw, (1, D), jnp.float32, -bound, bound)
    bias = jax.random.uniform(kb, (), jnp.float32, -bound, bound)

    y_ref = jax.nn.sigmoid(x @ weight.T + bias)

    # Pallas kernel path at the module's small shape (fast path disabled so the
    # kernel itself is exercised).
    y = logistic_regression_forward(x, weight, bias, allow_xla_fastpath=False)
    jax.block_until_ready(y)
    assert y.shape == (B, 1)
    assert jnp.allclose(y, y_ref, atol=5e-3), "pallas path mismatch"

    # Default path for a tiny problem takes the fused-XLA fast path.
    y_fast = logistic_regression_forward(x, weight, bias)
    jax.block_until_ready(y_fast)
    assert y_fast.shape == (B, 1)
    assert jnp.allclose(y_fast, y_ref, atol=5e-3), "fast path mismatch"

    # Ragged batch (not a multiple of the tile) exercises the boundary block
    # without any jnp.pad copy of X.
    B2 = 300
    x2 = jax.random.normal(kx, (B2, D), dtype=jnp.float32)
    y2_ref = jax.nn.sigmoid(x2 @ weight.T + bias)
    y2 = logistic_regression_forward(x2, weight, bias, allow_xla_fastpath=False)
    jax.block_until_ready(y2)
    assert y2.shape == (B2, 1)
    assert jnp.allclose(y2, y2_ref, atol=5e-3), "ragged pallas path mismatch"

    print("KERNEL_OK")
</pallas_src>

<mosaic_0001>
module attributes {stable_mosaic.version = 11 : i64} {
  func.func @_logreg_kernel(%arg0: i32, %arg1: memref<8x32xf32, #tpu.memory_space<vmem>>, %arg2: memref<1x32xf32, #tpu.memory_space<vmem>>, %arg3: memref<1x1xf32, #tpu.memory_space<smem>>, %arg4: memref<1x1x8xf32, #tpu.memory_space<vmem>>) attributes {dimension_semantics = [#tpu.dimension_semantics<parallel>], iteration_bounds = array<i64: 1>, scalar_prefetch = 0 : i64, scratch_operands = 0 : i64, tpu.core_type = #tpu.core_type<tc>, window_params = [{transform_indices = @transform_0, window_bounds = array<i64: 8, 32>}, {pipeline_mode = #tpu.pipeline_mode<synchronous>, transform_indices = @transform_1, window_bounds = array<i64: 1, 32>}, {transform_indices = @transform_2, window_bounds = array<i64: 1, 1>}, {transform_indices = @transform_3, window_bounds = array<i64: 1, 1, 8>}]} {
    %c0 = arith.constant 0 : index
    %c0_0 = arith.constant 0 : index
    %0 = vector.load %arg1[%c0, %c0_0] : memref<8x32xf32, #tpu.memory_space<vmem>>, vector<8x32xf32>
    %c0_1 = arith.constant 0 : index
    %c0_2 = arith.constant 0 : index
    %1 = vector.load %arg2[%c0_1, %c0_2] : memref<1x32xf32, #tpu.memory_space<vmem>>, vector<1x32xf32>
    "tpu.trace_start"() <{level = 10 : i32, message = "od,bd->ob"}> : () -> ()
    %cst = arith.constant dense<0.000000e+00> : vector<1x8xf32>
    %2 = tpu.matmul %1, %0, %cst {dimension_numbers = #tpu.dot_dimension_numbers<[1], [1], [0], [0], [0, 0, 1, 0], [], []>} : vector<1x32xf32>, vector<8x32xf32>, vector<1x8xf32> -> vector<1x8xf32>
    "tpu.trace_stop"() : () -> ()
    %c0_3 = arith.constant 0 : index
    %c0_4 = arith.constant 0 : index
    %3 = memref.load %arg3[%c0_3, %c0_4] : memref<1x1xf32, #tpu.memory_space<smem>>
    %4 = vector.broadcast %3 : f32 to vector<1x8xf32>
    %5 = arith.addf %2, %4 : vector<1x8xf32>
    %cst_5 = arith.constant 5.000000e-01 : f32
    %6 = vector.broadcast %cst_5 : f32 to vector<1x8xf32>
    %7 = arith.mulf %6, %5 : vector<1x8xf32>
    %8 = math.tanh %7 : vector<1x8xf32>
    %cst_6 = arith.constant 1.000000e+00 : f32
    %9 = vector.broadcast %cst_6 : f32 to vector<1x8xf32>
    %10 = arith.addf %8, %9 : vector<1x8xf32>
    %cst_7 = arith.constant 5.000000e-01 : f32
    %11 = vector.broadcast %cst_7 : f32 to vector<1x8xf32>
    %12 = arith.mulf %11, %10 : vector<1x8xf32>
    %c0_8 = arith.constant 0 : index
    %c0_9 = arith.constant 0 : index
    %c0_10 = arith.constant 0 : index
    %13 = vector.load %arg4[%c0_8, %c0_9, %c0_10] : memref<1x1x8xf32, #tpu.memory_space<vmem>>, vector<1x1x8xf32>
    %14 = vector.shape_cast %13 : vector<1x1x8xf32> to vector<1x8xf32>
    %15 = vector.shape_cast %12 : vector<1x8xf32> to vector<1x1x8xf32>
    tpu.vector_store %arg4[%c0_8, %c0_9, %c0_10], %15 {strides = array<i32>} : memref<1x1x8xf32, #tpu.memory_space<vmem>>, vector<1x1x8xf32>,
    return
  }
  func.func @transform_0(%arg0: i32) -> (i32, i32) {
    %c0_i32 = arith.constant 0 : i32
    %c0_i32_0 = arith.constant 0 : i32
    return %arg0, %c0_i32 : i32, i32
  }
  func.func @transform_1(%arg0: i32) -> (i32, i32) {
    %c0_i32 = arith.constant 0 : i32
    %c0_i32_0 = arith.constant 0 : i32
    %c0_i32_1 = arith.constant 0 : i32
    return %c0_i32, %c0_i32_0 : i32, i32
  }
  func.func @transform_2(%arg0: i32) -> (i32, i32) {
    %c0_i32 = arith.constant 0 : i32
    %c0_i32_0 = arith.constant 0 : i32
    %c0_i32_1 = arith.constant 0 : i32
    return %c0_i32, %c0_i32_0 : i32, i32
  }
  func.func @transform_3(%arg0: i32) -> (i32, i32, i32) {
    %c0_i32 = arith.constant 0 : i32
    %c0_i32_0 = arith.constant 0 : i32
    %c0_i32_1 = arith.constant 0 : i32
    return %arg0, %c0_i32, %c0_i32_0 : i32, i32, i32
  }
}

</mosaic_0001>

<llo_original>
// kernel: logistic_regression_forward.1
$region0: #{logistic_regression_forward.1}
  #allocation0 [shape = 'u32[]', space=smem, size = 0x4, offset = 0x4, fixed_abs, tag = 'smem constant byte address 0x4 - core index']
  #allocation1 [shape = 'u32[72,128]{1,0:T(1,128)}', space=vmem, size = 0x9000, scoped, tag = 'internal scratch']
  #allocation2 [shape = 'f32[1,1]{1,0:T(1,128)S(6)}', space=smem, size = 0x200, scoped, tag = 'scoped memory for logistic_regression_forward.1']
  %s0 = inlined_call_operand.hbm [shape: f32[8,32], index: 0, kind: input, shape index: {}]
  %s1 = inlined_call_operand.vmem [shape: f32[1,32], index: 1, kind: input, shape index: {}]
  %s2 = inlined_call_operand.<no memory space> [shape: f32[1,1], index: 2, kind: input, shape index: {}]
  %s3 = inlined_call_operand.hbm [shape: f32[1,1,8], index: 3, kind: output, shape index: {}]
  %s4 = sld [smem:[#allocation0]]
  $region26: #{logistic_regression_forward.1} parent=0
    _
  %s6 = ssub.s32 1, %s4
  %s7 = scalar_select 0, %s6, %s4
  %8 = sst [smem:[#allocation2]] %s2
  $region1: #{logistic_regression_forward.1} parent=0
    #allocation3 [shape = 'u8[4096]{0}', space=vmem, size = 0x1000, scoped, tag = 'input window, operand 0, single buffered']
    #allocation4 [shape = 's32[1]{0}', space=sflag, size = 0x4, scoped, tag = 'scoped memory for logistic_regression_forward.1']
    #allocation5 [shape = 's32[1]{0}', space=sflag, size = 0x4, scoped, tag = 'scoped memory for logistic_regression_forward.1']
    #allocation6 [shape = 'u8[512]{0}', space=vmem, size = 0x400, scoped, tag = 'output window, operand 0, single buffered']
    %9 = vsyncpa [#allocation4], 0
    %10 = vsyncpa [#allocation5], 0
    // Predicated region
    $region2: #{logistic_regression_forward.1} parent=1 // pred_check
      _
    $region3: #{logistic_regression_forward.1} parent=1 // pred_check_branch
      %12 = sbr.rel (0) target = $region5
    $region4: #{logistic_regression_forward.1} parent=1 // pred_region
      %14 = vsyncadd [#allocation4], 0
      %s16 = sshll.u32 %s0, 4
      %s17 = int_to_ptr.hbm [resolvable:$true] %s16
      %s18 = sshll.u32 [#allocation3], 4
      %s19 = int_to_ptr.vmem [resolvable:$true] %s18
      %21 = dma.hbm_to_vmem [thread:$0]  %s17, 128, %s19, [#allocation4]
    $region5: #{logistic_regression_forward.1} parent=1 // pred_fallthru
      _
    // Predicated region
    $region6: #{logistic_regression_forward.1} parent=1 // pred_check
      _
    $region7: #{logistic_regression_forward.1} parent=1 // pred_check_branch
      %23 = sbr.rel (0) target = $region9
    $region8: #{logistic_regression_forward.1} parent=1 // pred_region
      _
    $region9: #{logistic_regression_forward.1} parent=1 // pred_fallthru
      _
    // Predicated region
    $region10: #{logistic_regression_forward.1} parent=1 // pred_check
      _
    $region11: #{logistic_regression_forward.1} parent=1 // pred_check_branch
      %25 = sbr.rel (0) target = $region13
    $region12: #{logistic_regression_forward.1} parent=1 // pred_region
      _
    $region13: #{logistic_regression_forward.1} parent=1 // pred_fallthru
      _
    // Predicated region
    $region14: #{logistic_regression_forward.1} parent=1 // pred_check
      _
    $region15: #{logistic_regression_forward.1} parent=1 // pred_check_branch
      %27 = sbr.rel (0) target = $region17
    $region16: #{logistic_regression_forward.1} parent=1 // pred_region
      %29 = dma.done [#allocation4], 128
    $region17: #{logistic_regression_forward.1} parent=1 // pred_fallthru
      _
    %v30 = vld [vmem:[#allocation3] sm:$0xff]
    %v31 = vld [vmem:[%s1] sm:$0x1]
    %s32 = sld [smem:[#allocation2]]
    %v33 = vstv %s32
    %vm34 = vcmask 261120
    %v36 = vsel %vm34, %v31, 0
    %v39 = vsel %vm34, %v30, 0
    %41 = vmatpush.xpose.msra.mxu0 0.0
    %42 = vmatpush.xpose.msra.mxu0 0.0
    %43 = vmatpush.xpose.msra.mxu0 0.0
    %44 = vmatpush.xpose.msra.mxu0 0.0
    %45 = vmatpush.xpose.msra.mxu0 0.0
    %46 = vmatpush.xpose.msra.mxu0 0.0
    %47 = vmatpush.xpose.msra.mxu0 0.0
    %48 = vmatpush.xpose.msra.mxu0 0.0
    %49 = vmatpush.xpose.msra.mxu0 0.0
    %50 = vmatpush.xpose.msra.mxu0 0.0
    %51 = vmatpush.xpose.msra.mxu0 0.0
    %52 = vmatpush.xpose.msra.mxu0 0.0
    %53 = vmatpush.xpose.msra.mxu0 0.0
    %54 = vmatpush.xpose.msra.mxu0 0.0
    %55 = vmatpush.xpose.msra.mxu0 0.0
    %56 = vmatpush.xpose.msra.mxu0 %v39
    %57 = vmatmul.f32.gmra.mxu0 %v36
    %v58 = vpop.f32.mrf.mxu0
    %v59 = vadd.f32 %v33, %v58
    %60 = vdwg.mxu0
    %v61 = vmul.f32 %v59, 0.5
    %v62 = vtanh.pop %v61
    %v63 = vadd.f32 %v62, 1.0
    %v64 = vmul.f32 %v63, 0.5
    %vm65 = vcmask 57344
    %66 = vst.msk [vmem:[#allocation6] sm:$0x1] %vm65, %v64
    // Predicated region
    $region18: #{logistic_regression_forward.1} parent=1 // pred_check
      _
    $region19: #{logistic_regression_forward.1} parent=1 // pred_check_branch
      %68 = sbr.rel (0) target = $region21
    $region20: #{logistic_regression_forward.1} parent=1 // pred_region
      %70 = vsyncadd [#allocation5], 0
      %s72 = sshll.u32 [#allocation6], 4
      %s73 = int_to_ptr.vmem [resolvable:$true] %s72
      %s74 = sshll.u32 %s3, 4
      %s75 = int_to_ptr.hbm [resolvable:$true] %s74
      %77 = dma.vmem_to_hbm [thread:$0]  %s73, 16, %s75, [#allocation5]
    $region21: #{logistic_regression_forward.1} parent=1 // pred_fallthru
      _
    // Predicated region
    $region22: #{logistic_regression_forward.1} parent=1 // pred_check
      _
    $region23: #{logistic_regression_forward.1} parent=1 // pred_check_branch
      %79 = sbr.rel (0) target = $region25
    $region24: #{logistic_regression_forward.1} parent=1 // pred_region
      %81 = dma.done [#allocation5], 16
    $region25: #{logistic_regression_forward.1} parent=1 // pred_fallthru
      _
    %82 = vsyncpa [#allocation4], 1
    %83 = vsyncpa [#allocation5], 1

</llo_original>
